<compile_context>
chip_gen: v5e
topology: v5e:2x2
jax: 0.10.0
libtpu: 0.0.40
codegen_flags: <defaults>
</compile_context>

<pallas_src>
import functools

import jax
import jax.numpy as jnp
from jax.experimental import pallas as pl
from jax.experimental.pallas import tpu as pltpu


def _mae_loss_kernel(x_ref, out_ref, *, n_true, category, tiles_per_core):
    # x_ref  : (category+1, T) packed block; rows 0..C-1 logits, row C target id
    # out_ref: (1, 1) f32 SMEM partial sum of p_target for this core
    c_id = pl.program_id(0)            # core-split index   (parallel axis)
    i = pl.program_id(1)               # tile index per core (reduction axis)

    @pl.when(i == 0)
    def _init():
        out_ref[0, 0] = 0.0

    logits = x_ref[:category, :].astype(jnp.float32)              # (C, T)
    tgt_i = x_ref[category:category + 1, :].astype(jnp.float32).astype(jnp.int32)  # (1, T)

    c, t = logits.shape
    row = jax.lax.broadcasted_iota(jnp.int32, (c, t), 0)          # (C, T)

    # target-class logit per column (one-hot compare + sublane sum, no gather)
    x_t = jnp.sum(jnp.where(row == tgt_i, logits, 0.0),
                  axis=0, keepdims=True)                          # (1, T)

    # p_target = softmax(x)_t = 1 / sum_j exp(x_j - x_t)   (denominator >= 1)
    s = jnp.sum(jnp.exp(logits - x_t), axis=0, keepdims=True)     # (1, T)
    inv = pl.reciprocal(s, approx=True)                           # EUP slot
    inv = inv * (2.0 - s * inv)                                   # one Newton step -> ~f32 exact

    # mask ragged-tail / clamped-duplicate columns (logical global column index)
    # and exp-overflow columns (s == inf => p_t -> 0, the correct limit).
    block_idx = c_id * tiles_per_core + i
    col = block_idx * t + jax.lax.broadcasted_iota(jnp.int32, (1, t), 1)
    p_t = jnp.where((col < n_true) & (s < jnp.float32(3.0e38)), inv, 0.0)

    out_ref[0, 0] += jnp.sum(p_t)      # per-core partial sum accumulates in SMEM


@functools.partial(jax.jit, static_argnames=("category", "tile_n"))
def mae_loss(pre, target, category=6, tile_n=262144):
    """pre: (..., category) float logits; target: (...) int class ids -> scalar loss."""
    assert pre.shape[-1] == category
    assert pre.shape[:-1] == target.shape

    n = 1
    for d in target.shape:
        n *= d

    # Pack targets as one extra float "class row" (ids < category are exact in
    # bf16/f16/f32); keep the producer dtype -- the kernel upcasts per tile.
    x2d = pre.reshape(n, category)
    t_col = target.reshape(n, 1).astype(pre.dtype)
    packed = jnp.concatenate([x2d, t_col], axis=1).T              # (category+1, N)

    # Tile sizing: multiple of 128; 262144 cols * 8 sublanes * 4B = 8 MiB/buffer
    # (x2 double-buffered = 16 MiB) -> fits every generation with a 32 MiB limit.
    t_n = max(128, min(int(tile_n), 262144)) // 128 * 128
    if n <= t_n:
        t_n = n                        # single block; block dim == full array dim is legal
        tiles_total = 1
    else:
        tiles_total = (n + t_n - 1) // t_n   # ragged tail masked in-kernel (no jnp.pad)

    n_cores = 2 if tiles_total >= 2 else 1   # v7x megacore split; harmless on 1-TC chips
    tiles_per_core = (tiles_total + n_cores - 1) // n_cores

    kernel = functools.partial(_mae_loss_kernel, n_true=n, category=category,
                               tiles_per_core=tiles_per_core)

    def in_map(c, i):
        # Clamp a fully out-of-range block (odd tile count split over 2 cores)
        # onto the last real block; the kernel's column mask discards it.
        return (0, jnp.minimum(c * tiles_per_core + i, tiles_total - 1))

    partials = pl.pallas_call(
        kernel,
        out_shape=jax.ShapeDtypeStruct((n_cores, 1), jnp.float32),
        grid_spec=pltpu.PrefetchScalarGridSpec(
            num_scalar_prefetch=0,
            grid=(n_cores, tiles_per_core),
            in_specs=[pl.BlockSpec((category + 1, t_n), in_map)],
            out_specs=pl.BlockSpec((1, 1), lambda c, i: (c, 0),
                                   memory_space=pltpu.SMEM),
        ),
        compiler_params=pltpu.CompilerParams(
            dimension_semantics=("parallel", "arbitrary"),
            vmem_limit_bytes=32 * 1024 * 1024,
        ),
    )(packed)

    sum_pt = jnp.sum(partials)
    n_f = jnp.float32(n)
    return 2.0 * (n_f - sum_pt) / (n_f * jnp.float32(category))


def _reference(pre, target, category):
    p = jax.nn.softmax(pre, axis=-1)
    oh = jax.nn.one_hot(target, category, dtype=jnp.float32)
    return jnp.mean(jnp.abs(p - oh))


if __name__ == "__main__":
    category = 6
    key = jax.random.PRNGKey(0)
    k1, k2, k3, k4 = jax.random.split(key, 4)

    # --- test 1: small shape from the module spec (single-block path) ---
    batch, seq = 2, 8
    pre = jax.random.normal(k1, (batch, seq, category), dtype=jnp.float32)
    target = jax.random.randint(k2, (batch, seq), 0, category, dtype=jnp.int32)

    loss = mae_loss(pre, target, category=category)
    jax.block_until_ready(loss)
    ref = _reference(pre, target, category)
    assert jnp.allclose(loss, ref, atol=1e-6, rtol=1e-5), (loss, ref)

    # --- test 2: small tile to exercise the multi-tile / ragged-tail /
    #     2-way core-split path (tiles_total=3, grid=(2,2), clamped last block) ---
    batch2, seq2 = 2, 150
    pre2 = jax.random.normal(k3, (batch2, seq2, category), dtype=jnp.float32)
    target2 = jax.random.randint(k4, (batch2, seq2), 0, category, dtype=jnp.int32)

    loss2 = mae_loss(pre2, target2, category=category, tile_n=128)
    jax.block_until_ready(loss2)
    ref2 = _reference(pre2, target2, category)
    assert jnp.allclose(loss2, ref2, atol=1e-6, rtol=1e-5), (loss2, ref2)

    print("KERNEL_OK")
</pallas_src>

<mosaic_0001>
module attributes {stable_mosaic.version = 11 : i64} {
  func.func @_mae_loss_kernel(%arg0: i32, %arg1: i32, %arg2: memref<7x16xf32, #tpu.memory_space<vmem>>, %arg3: memref<1x1xf32, #tpu.memory_space<smem>>) attributes {dimension_semantics = [#tpu.dimension_semantics<parallel>, #tpu.dimension_semantics<arbitrary>], iteration_bounds = array<i64: 1, 1>, scalar_prefetch = 0 : i64, scratch_operands = 0 : i64, tpu.core_type = #tpu.core_type<tc>, window_params = [{transform_indices = @transform_0, window_bounds = array<i64: 7, 16>}, {transform_indices = @transform_1, window_bounds = array<i64: 1, 1>}]} {
    %c0_i32 = arith.constant 0 : i32
    %0 = arith.cmpi eq, %arg1, %c0_i32 : i32
    %1 = arith.extui %0 : i1 to i32
    %c0_i32_0 = arith.constant 0 : i32
    %2 = arith.cmpi ne, %1, %c0_i32_0 : i32
    scf.if %2 {
      %cst_14 = arith.constant 0.000000e+00 : f32
      %c0_15 = arith.constant 0 : index
      %c0_16 = arith.constant 0 : index
      %43 = memref.load %arg3[%c0_15, %c0_16] : memref<1x1xf32, #tpu.memory_space<smem>>
      memref.store %cst_14, %arg3[%c0_15, %c0_16] : memref<1x1xf32, #tpu.memory_space<smem>>
    } else {
    }
    %c0 = arith.constant 0 : index
    %c0_1 = arith.constant 0 : index
    %3 = vector.load %arg2[%c0, %c0_1] : memref<7x16xf32, #tpu.memory_space<vmem>>, vector<6x16xf32>
    %c6 = arith.constant 6 : index
    %c0_2 = arith.constant 0 : index
    %4 = vector.load %arg2[%c6, %c0_2] : memref<7x16xf32, #tpu.memory_space<vmem>>, vector<1x16xf32>
    %5 = arith.fptosi %4 : vector<1x16xf32> to vector<1x16xi32>
    %6 = tpu.iota {dimensions = array<i32: 0>} : vector<6x16xi32>
    %7 = vector.broadcast %5 : vector<1x16xi32> to vector<6x16xi32>
    %8 = arith.cmpi eq, %6, %7 : vector<6x16xi32>
    %cst = arith.constant 0.000000e+00 : f32
    %9 = vector.broadcast %cst : f32 to vector<6x16xf32>
    %10 = arith.select %8, %3, %9 : vector<6x16xi1>, vector<6x16xf32>
    %cst_3 = arith.constant dense<0.000000e+00> : vector<16xf32>
    %11 = vector.multi_reduction <add>, %10, %cst_3 [0] : vector<6x16xf32> to vector<16xf32>
    %12 = vector.shape_cast %11 : vector<16xf32> to vector<1x16xf32>
    %13 = vector.broadcast %12 : vector<1x16xf32> to vector<6x16xf32>
    %14 = arith.subf %3, %13 : vector<6x16xf32>
    %15 = math.exp %14 : vector<6x16xf32>
    %cst_4 = arith.constant dense<0.000000e+00> : vector<16xf32>
    %16 = vector.multi_reduction <add>, %15, %cst_4 [0] : vector<6x16xf32> to vector<16xf32>
    %17 = vector.shape_cast %16 : vector<16xf32> to vector<1x16xf32>
    %18 = tpu.reciprocal %17 {approx = true} : vector<1x16xf32> -> vector<1x16xf32>
    %19 = arith.mulf %17, %18 : vector<1x16xf32>
    %cst_5 = arith.constant 2.000000e+00 : f32
    %20 = vector.broadcast %cst_5 : f32 to vector<1x16xf32>
    %21 = arith.subf %20, %19 : vector<1x16xf32>
    %22 = arith.mulf %18, %21 : vector<1x16xf32>
    %c1_i32 = arith.constant 1 : i32
    %23 = arith.muli %arg0, %c1_i32 : i32
    %24 = arith.addi %23, %arg1 : i32
    %c16_i32 = arith.constant 16 : i32
    %25 = arith.muli %24, %c16_i32 : i32
    %26 = tpu.iota {dimensions = array<i32: 1>} : vector<1x16xi32>
    %27 = vector.broadcast %25 : i32 to vector<1x16xi32>
    %28 = arith.addi %27, %26 : vector<1x16xi32>
    %c16_i32_6 = arith.constant 16 : i32
    %29 = vector.broadcast %c16_i32_6 : i32 to vector<1x16xi32>
    %30 = arith.cmpi slt, %28, %29 : vector<1x16xi32>
    %cst_7 = arith.constant 3.000000e+38 : f32
    %31 = vector.broadcast %cst_7 : f32 to vector<1x16xf32>
    %32 = arith.cmpf olt, %17, %31 : vector<1x16xf32>
    %33 = arith.andi %30, %32 : vector<1x16xi1>
    %cst_8 = arith.constant 0.000000e+00 : f32
    %34 = vector.broadcast %cst_8 : f32 to vector<1x16xf32>
    %35 = arith.select %33, %22, %34 : vector<1x16xi1>, vector<1x16xf32>
    %c0_9 = arith.constant 0 : index
    %c0_10 = arith.constant 0 : index
    %36 = memref.load %arg3[%c0_9, %c0_10] : memref<1x1xf32, #tpu.memory_space<smem>>
    %37 = vector.shape_cast %35 : vector<1x16xf32> to vector<1x1x16xf32>
    %cst_11 = arith.constant dense<0.000000e+00> : vector<1xf32>
    %38 = vector.multi_reduction <add>, %37, %cst_11 [1, 2] : vector<1x1x16xf32> to vector<1xf32>
    %39 = vector.shape_cast %38 : vector<1xf32> to vector<1x1x1xf32>
    %40 = vector.extract %39[0, 0, 0] : f32 from vector<1x1x1xf32>
    %41 = arith.addf %36, %40 : f32
    %c0_12 = arith.constant 0 : index
    %c0_13 = arith.constant 0 : index
    %42 = memref.load %arg3[%c0_12, %c0_13] : memref<1x1xf32, #tpu.memory_space<smem>>
    memref.store %41, %arg3[%c0_12, %c0_13] : memref<1x1xf32, #tpu.memory_space<smem>>
    return
  }
  func.func @transform_0(%arg0: i32, %arg1: i32) -> (i32, i32) {
    %c1_i32 = arith.constant 1 : i32
    %0 = arith.muli %arg0, %c1_i32 : i32
    %1 = arith.addi %0, %arg1 : i32
    %c0_i32 = arith.constant 0 : i32
    %2 = arith.minsi %1, %c0_i32 : i32
    %c0_i32_0 = arith.constant 0 : i32
    %c0_i32_1 = arith.constant 0 : i32
    return %c0_i32_0, %2 : i32, i32
  }
  func.func @transform_1(%arg0: i32, %arg1: i32) -> (i32, i32) {
    %c0_i32 = arith.constant 0 : i32
    %c0_i32_0 = arith.constant 0 : i32
    return %arg0, %c0_i32 : i32, i32
  }
}

</mosaic_0001>

<llo_original>
// kernel: mae_loss.1
$region0: #{mae_loss.1}
  #allocation0 [shape = 'u32[]', space=smem, size = 0x4, offset = 0x4, fixed_abs, tag = 'smem constant byte address 0x4 - core index']
  #allocation1 [shape = 'u32[72,128]{1,0:T(1,128)}', space=vmem, size = 0x9000, scoped, tag = 'internal scratch']
  %s0 = inlined_call_operand.vmem [shape: f32[7,16], index: 0, kind: input, shape index: {}]
  %s1 = inlined_call_operand.hbm [shape: f32[1,1], index: 1, kind: output, shape index: {}]
  %s2 = sld [smem:[#allocation0]]
  $region18: #{mae_loss.1} parent=0
    _
  %s4 = ssub.s32 1, %s2
  %s5 = scalar_select 0, %s4, %s2
  $region1: #{mae_loss.1} parent=0
    #allocation2 [shape = 'u8[512]{0}', space=smem, size = 0x200, scoped, tag = 'output window, operand 0, single buffered']
    #allocation3 [shape = 's32[1]{0}', space=sflag, size = 0x4, scoped, tag = 'scoped memory for mae_loss.1']
    %6 = vsyncpa [#allocation3], 0
    // Predicated region
    $region2: #{mae_loss.1} parent=1 // pred_check
      _
    $region3: #{mae_loss.1} parent=1 // pred_check_branch
      %8 = sbr.rel (0) target = $region5
    $region4: #{mae_loss.1} parent=1 // pred_region
      %s9 = sadd.s32 0, 0
      %p10 = scmp.lt.s32.totalorder %s9, 0
      %s11 = scalar_select %p10, %s9, 0
      %p12 = scmp.lt.s32.totalorder %s11, 0
      %s13 = scalar_select %p12, %s11, 0
      %s14 = smul.addr %s13, 8
      %s15 = scalar_lea.vmem %s0, %s14
      %s16 = sadd.s32 0, 0
      %p17 = scmp.lt.s32.totalorder %s16, 0
      %s18 = scalar_select %p17, %s16, 0
    $region5: #{mae_loss.1} parent=1 // pred_fallthru
      _
    %s19 = sadd.s32 0, 0
    %p20 = scmp.lt.s32.totalorder %s19, 0
    %s21 = scalar_select %p20, %s19, 0
    %p22 = scmp.lt.s32.totalorder %s21, 0
    %s23 = scalar_select %p22, %s21, 0
    %s24 = smul.addr %s23, 8
    %s25 = scalar_lea.vmem %s0, %s24
    %s26 = sadd.s32 0, 0
    %p27 = scmp.lt.s32.totalorder %s26, 0
    %s28 = scalar_select %p27, %s26, 0
    %p29 = scmp.lt.s32.totalorder %s28, 0
    %s30 = scalar_select %p29, %s28, 0
    %s31 = smul.addr %s30, 8
    %s32 = scalar_lea.vmem %s0, %s31
    %s33 = sadd.s32 0, 0
    %p34 = scmp.lt.s32.totalorder %s33, 0
    %s35 = scalar_select %p34, %s33, 0
    %p36 = scmp.eq.s32.totalorder 0, 0
    // Predicated region
    $region6: #{mae_loss.1} parent=1 // pred_check
      %p37 = pneg %p36
    $region7: #{mae_loss.1} parent=1 // pred_check_branch
      %39 = sbr.rel (%p37) target = $region9
    $region8: #{mae_loss.1} parent=1 // pred_region
      %s40 = scalar_lea.smem [#allocation2], 0
      %41 = sst [smem:[%s40]] 0.0
    $region9: #{mae_loss.1} parent=1 // pred_fallthru
      _
    %v42 = vld [vmem:[%s32] sm:$0x3f]
    %v43 = vld [vmem:[%s32 + $0x6] sm:$0x1]
    %v44 = vcvt.f32.s32.to.zero.pseudo %v43
    %v45 = vlaneseq
    %v46 = vshrl.u32 %v45, 7
    %v47 = vperm.slane %v44, 0
    %vm48 = vcmp.eq.s32.totalorder %v46, %v47
    %v49 = vsel %vm48, %v42, 0.0
    %vm50 = vcmask 128000
    %v51 = vsel %vm50, %v49, 0.0
    %v52 = vrot.slane %v51, 4
    %v53 = vadd.f32 %v51, %v52
    %v54 = vrot.slane %v53, 2
    %v55 = vadd.f32 %v53, %v54
    %v56 = vrot.slane %v55, 1
    %v57 = vadd.f32 %v55, %v56
    %v58 = vsub.f32 %v42, %v57
    %v59 = vmul.f32 %v58, 1.442695
    %v60 = vpow.pop %v59
    %v61 = vsel %vm50, %v60, 0.0
    %v62 = vrot.slane %v61, 4
    %v63 = vadd.f32 %v61, %v62
    %v64 = vrot.slane %v63, 2
    %v65 = vadd.f32 %v63, %v64
    %v66 = vrot.slane %v65, 1
    %v67 = vadd.f32 %v65, %v66
    %v68 = vrcp.pop %v67
    %v69 = vmul.f32 %v67, %v68
    %v70 = vsub.f32 2.0, %v69
    %v71 = vmul.f32 %v68, %v70
    %s72 = sadd.s32 0, 0
    %s73 = smul.u32 %s72, 16
    %v74 = vlaneseq
    %v75 = vand.u32 %v74, 127
    %v76 = vstv %s73
    %v77 = vadd.s32 %v76, %v75
    %vm78 = vcmp.lt.s32.totalorder %v77, 16
    %vm79 = vcmp.lt.f32.partialorder %v67, 3e+38
    %vm80 = vmand %vm78, %vm79
    %v81 = vsel %vm80, %v71, 0.0
    %s82 = sld [smem:[#allocation2]]
    %vm83 = vcmask 122880
    %v84 = vsel %vm83, %v81, 0.0
    %85 = vadd.xlane.f32.xlu0 %v84
    %v86 = vpop.xlane.xlu0 %85
    %v87 = vrot.slane %v86, 4
    %v88 = vadd.f32 %v86, %v87
    %v89 = vrot.slane %v88, 2
    %v90 = vadd.f32 %v88, %v89
    %v91 = vrot.slane %v90, 1
    %v92 = vadd.f32 %v90, %v91
    %s93 = vtos %v92
    %s94 = sadd.f32 %s82, %s93
    %s95 = scalar_lea.smem [#allocation2], 0
    %96 = sst [smem:[%s95]] %s94
    // Predicated region
    $region10: #{mae_loss.1} parent=1 // pred_check
      _
    $region11: #{mae_loss.1} parent=1 // pred_check_branch
      %98 = sbr.rel (0) target = $region13
    $region12: #{mae_loss.1} parent=1 // pred_region
      %100 = vsyncadd [#allocation3], 0
      %s102 = sshll.u32 %s1, 4
      %s103 = int_to_ptr.hbm [resolvable:$true] %s102
      %105 = dma.smem_to_hbm [#allocation2], 16, %s103, [#allocation3]
    $region13: #{mae_loss.1} parent=1 // pred_fallthru
      _
    // Predicated region
    $region14: #{mae_loss.1} parent=1 // pred_check
      _
    $region15: #{mae_loss.1} parent=1 // pred_check_branch
      %107 = sbr.rel (0) target = $region17
    $region16: #{mae_loss.1} parent=1 // pred_region
      %109 = dma.done [#allocation3], 16
    $region17: #{mae_loss.1} parent=1 // pred_fallthru
      _
    %110 = sfence
    %111 = vsyncpa [#allocation3], 1

</llo_original>
